<compile_context>
chip_gen: v7x
topology: tpu7x:2x2x1
jax: 0.10.0
libtpu: 0.0.40
codegen_flags: <defaults>
</compile_context>

<pallas_src>
import jax
import jax.numpy as jnp
from jax.experimental import pallas as pl
from jax.experimental.pallas import tpu as pltpu


# ----------------------------------------------------------------------------
# Pallas kernel: deconv(k=2, s=2) as one matmul + folded BN + ReLU (bf16 store)
# ----------------------------------------------------------------------------
def _deconv2x2_bn_relu_kernel(x_ref, w_ref, scale_ref, bias_ref, o_ref):
    # x_ref     : (1, Cin, TM)     input dtype (NCHW-flattened spatial tile)
    # w_ref     : (4*Cout, Cin)    bf16, rows ordered (co, dy, dx)
    # scale_ref : (4*Cout, 1)      f32 folded BN scale (per packed row)
    # bias_ref  : (4*Cout, 1)      f32 folded BN bias  (per packed row)
    # o_ref     : (1, 4*Cout, TM)  bf16
    x = x_ref[0].astype(w_ref.dtype)                                   # VPU cast
    y = jnp.dot(w_ref[...], x, preferred_element_type=jnp.float32)    # MXU
    y = y * scale_ref[...] + bias_ref[...]        # folded BatchNorm (eval mode)
    o_ref[0] = jnp.maximum(y, 0.0).astype(o_ref.dtype)   # ReLU + bf16 writeback


# ----------------------------------------------------------------------------
# Tile-size selection: biggest spatial tile that double-buffers within budget,
# always an exact divisor of H*W (no padded spatial columns).
# ----------------------------------------------------------------------------
def _pick_tile_m(hw, cin, cout, x_itemsize, out_itemsize,
                 max_tm=2048, tile_vmem_budget=12 * 1024 * 1024):
    per_col = 2 * (cin * x_itemsize + 4 * cout * out_itemsize)  # dbl-buffered in+out
    cap = max(128, int(tile_vmem_budget // per_col))
    cap = min(cap, max_tm)
    if hw <= cap:
        return hw
    # largest multiple of 128 <= cap that divides hw (lane-dense blocks)
    t = (cap // 128) * 128
    while t >= 128:
        if hw % t == 0:
            return t
        t -= 128
    # fall back: largest divisor of hw <= cap (still exact, possibly <128 lanes)
    for t in range(cap, 0, -1):
        if hw % t == 0:
            return t
    return hw


# ----------------------------------------------------------------------------
# Wrapper: NCHW in / NCHW out, matching the PyTorch module
# ----------------------------------------------------------------------------
def trans_basic_conv2d(x_nchw, w_iokk, gamma, beta, running_mean, running_var,
                       eps=1e-5, *, max_tile_m=2048, mxu_dtype=jnp.bfloat16,
                       store_dtype=jnp.bfloat16, out_dtype=None):
    """ConvTranspose2d(k=2, s=2, p=0, bias=False) + BatchNorm2d(eval) + ReLU."""
    N, Cin, H, W = x_nchw.shape
    Cin_w, Cout, KH, KW = w_iokk.shape
    assert (KH, KW) == (2, 2) and Cin_w == Cin
    out_dtype = out_dtype or x_nchw.dtype
    HW = H * W

    # ---- fold BatchNorm (eval) into per-(co,dy,dx)-row scale / bias
    scale = gamma / jnp.sqrt(running_var + eps)
    bias = beta - running_mean * scale
    scale4 = jnp.repeat(scale, 4).reshape(4 * Cout, 1).astype(jnp.float32)
    bias4 = jnp.repeat(bias, 4).reshape(4 * Cout, 1).astype(jnp.float32)

    # ---- pack weight: (Cin, Cout, 2, 2) -> (4*Cout, Cin), rows (co, dy, dx)
    w_packed = jnp.transpose(w_iokk, (1, 2, 3, 0)).reshape(4 * Cout, Cin)
    w_packed = w_packed.astype(mxu_dtype)

    # ---- x stays NCHW: flatten spatial dims only (free reshape, no transpose)
    x_flat = x_nchw.reshape(N, Cin, HW)

    # ---- spatial tile (lane dim), VMEM budgeted; keep >=2 grid steps for v7x
    x_itemsize = x_nchw.dtype.itemsize
    out_itemsize = jnp.dtype(store_dtype).itemsize
    TM = _pick_tile_m(HW, Cin, Cout, x_itemsize, out_itemsize, max_tile_m)
    if N * (HW // TM) < 2 and TM % 2 == 0:
        TM //= 2
    grid = (N, HW // TM)

    # ---- cost estimate (mem-bound op: let XLA schedule around the call)
    flops = 2 * N * HW * Cin * 4 * Cout
    bytes_accessed = (N * Cin * HW * x_itemsize
                      + 4 * Cout * Cin * 2
                      + N * 4 * Cout * HW * out_itemsize)
    cost = pl.CostEstimate(flops=flops, transcendentals=0,
                           bytes_accessed=bytes_accessed)

    out_packed = pl.pallas_call(
        _deconv2x2_bn_relu_kernel,
        out_shape=jax.ShapeDtypeStruct((N, 4 * Cout, HW), store_dtype),
        grid=grid,
        in_specs=[
            pl.BlockSpec((1, Cin, TM), lambda n, m: (n, 0, m)),
            pl.BlockSpec((4 * Cout, Cin), lambda n, m: (0, 0)),
            pl.BlockSpec((4 * Cout, 1), lambda n, m: (0, 0)),
            pl.BlockSpec((4 * Cout, 1), lambda n, m: (0, 0)),
        ],
        out_specs=pl.BlockSpec((1, 4 * Cout, TM), lambda n, m: (n, 0, m)),
        compiler_params=pltpu.CompilerParams(
            dimension_semantics=("parallel", "parallel"),
            vmem_limit_bytes=32 * 1024 * 1024),
        cost_estimate=cost,
    )(x_flat, w_packed, scale4, bias4)

    # ---- single fused layout pass: (N, Cout, 2, 2, H, W) -> NCHW (+ dtype cast)
    y = out_packed.reshape(N, Cout, 2, 2, H, W)
    y = jnp.transpose(y, (0, 1, 4, 2, 5, 3))            # (N, Cout, H, dy, W, dx)
    return y.reshape(N, Cout, 2 * H, 2 * W).astype(out_dtype)


# ----------------------------------------------------------------------------
# Pure-JAX reference (same bf16 operand quantization, f32 accumulation/epilogue)
# ----------------------------------------------------------------------------
def _reference(x_nchw, w_iokk, gamma, beta, running_mean, running_var,
               eps=1e-5, mxu_dtype=jnp.bfloat16):
    xq = x_nchw.astype(mxu_dtype).astype(jnp.float32)
    wq = w_iokk.astype(mxu_dtype).astype(jnp.float32)
    y = jnp.einsum('nihw,ioyx->nohwyx', xq, wq)          # (N, Cout, H, W, 2, 2)
    N, Co, H, W, _, _ = y.shape
    y = jnp.transpose(y, (0, 1, 2, 4, 3, 5)).reshape(N, Co, 2 * H, 2 * W)
    scale = gamma / jnp.sqrt(running_var + eps)
    bias = beta - running_mean * scale
    y = jnp.maximum(y * scale[None, :, None, None] + bias[None, :, None, None], 0.0)
    return y


# ----------------------------------------------------------------------------
if __name__ == "__main__":
    key = jax.random.PRNGKey(0)
    k1, k2, k3, k4, k5, k6 = jax.random.split(key, 6)

    N, Cin, Cout, H, W = 2, 32, 32, 16, 16               # small test shapes

    x = jax.random.normal(k1, (N, Cin, H, W), jnp.float32)
    w = (jax.random.normal(k2, (Cin, Cout, 2, 2), jnp.float32)
         / jnp.sqrt(jnp.float32(Cin * 4)))               # (Cin, Cout, kH, kW)
    gamma = 1.0 + 0.1 * jax.random.normal(k3, (Cout,), jnp.float32)
    beta = 0.1 * jax.random.normal(k4, (Cout,), jnp.float32)
    running_mean = 0.1 * jax.random.normal(k5, (Cout,), jnp.float32)
    running_var = 1.0 + 0.1 * jax.random.uniform(k6, (Cout,), jnp.float32)

    fwd = jax.jit(trans_basic_conv2d)
    out = fwd(x, w, gamma, beta, running_mean, running_var)
    jax.block_until_ready(out)

    assert out.shape == (N, Cout, 2 * H, 2 * W) and out.dtype == jnp.float32

    ref = _reference(x, w, gamma, beta, running_mean, running_var)
    max_err = float(jnp.max(jnp.abs(out - ref)))
    # tolerance covers the bf16 output store (reference keeps f32 epilogue)
    assert max_err < 3e-2, f"max abs err {max_err}"

    print("KERNEL_OK")
</pallas_src>

<mosaic_0001>
module attributes {stable_mosaic.version = 11 : i64} {
  func.func @_deconv2x2_bn_relu_kernel(%arg0: i32, %arg1: i32, %arg2: memref<1x32x256xf32, #tpu.memory_space<vmem>>, %arg3: memref<128x32xbf16, #tpu.memory_space<vmem>>, %arg4: memref<128x1xf32, #tpu.memory_space<vmem>>, %arg5: memref<128x1xf32, #tpu.memory_space<vmem>>, %arg6: memref<1x128x256xbf16, #tpu.memory_space<vmem>>) attributes {dimension_semantics = [#tpu.dimension_semantics<parallel>, #tpu.dimension_semantics<parallel>], iteration_bounds = array<i64: 2, 1>, scalar_prefetch = 0 : i64, scratch_operands = 0 : i64, tpu.core_type = #tpu.core_type<tc>, window_params = [{transform_indices = @transform_0, window_bounds = array<i64: 1, 32, 256>}, {pipeline_mode = #tpu.pipeline_mode<synchronous>, transform_indices = @transform_1, window_bounds = array<i64: 128, 32>}, {pipeline_mode = #tpu.pipeline_mode<synchronous>, transform_indices = @transform_2, window_bounds = array<i64: 128, 1>}, {pipeline_mode = #tpu.pipeline_mode<synchronous>, transform_indices = @transform_3, window_bounds = array<i64: 128, 1>}, {transform_indices = @transform_4, window_bounds = array<i64: 1, 128, 256>}]} {
    %c0 = arith.constant 0 : index
    %c0_0 = arith.constant 0 : index
    %c0_1 = arith.constant 0 : index
    %0 = vector.load %arg2[%c0, %c0_0, %c0_1] : memref<1x32x256xf32, #tpu.memory_space<vmem>>, vector<1x32x256xf32>
    %1 = vector.shape_cast %0 : vector<1x32x256xf32> to vector<32x256xf32>
    %2 = arith.truncf %1 : vector<32x256xf32> to vector<32x256xbf16>
    %c0_2 = arith.constant 0 : index
    %c0_3 = arith.constant 0 : index
    %3 = vector.load %arg3[%c0_2, %c0_3] : memref<128x32xbf16, #tpu.memory_space<vmem>>, vector<128x32xbf16>
    %cst = arith.constant dense<0.000000e+00> : vector<128x256xf32>
    %4 = tpu.matmul %3, %2, %cst {dimension_numbers = #tpu.dot_dimension_numbers<[1], [0], [0], [1], [0, 0, 1, 1], [], []>} : vector<128x32xbf16>, vector<32x256xbf16>, vector<128x256xf32> -> vector<128x256xf32>
    %c0_4 = arith.constant 0 : index
    %c0_5 = arith.constant 0 : index
    %5 = vector.load %arg4[%c0_4, %c0_5] : memref<128x1xf32, #tpu.memory_space<vmem>>, vector<128x1xf32>
    %6 = vector.broadcast %5 : vector<128x1xf32> to vector<128x256xf32>
    %7 = arith.mulf %4, %6 : vector<128x256xf32>
    %c0_6 = arith.constant 0 : index
    %c0_7 = arith.constant 0 : index
    %8 = vector.load %arg5[%c0_6, %c0_7] : memref<128x1xf32, #tpu.memory_space<vmem>>, vector<128x1xf32>
    %9 = vector.broadcast %8 : vector<128x1xf32> to vector<128x256xf32>
    %10 = arith.addf %7, %9 : vector<128x256xf32>
    %cst_8 = arith.constant 0.000000e+00 : f32
    %11 = vector.broadcast %cst_8 : f32 to vector<128x256xf32>
    %12 = arith.maximumf %10, %11 : vector<128x256xf32>
    %13 = arith.truncf %12 : vector<128x256xf32> to vector<128x256xbf16>
    %c0_9 = arith.constant 0 : index
    %c0_10 = arith.constant 0 : index
    %c0_11 = arith.constant 0 : index
    %14 = vector.load %arg6[%c0_9, %c0_10, %c0_11] : memref<1x128x256xbf16, #tpu.memory_space<vmem>>, vector<1x128x256xbf16>
    %15 = vector.shape_cast %14 : vector<1x128x256xbf16> to vector<128x256xbf16>
    %16 = vector.shape_cast %13 : vector<128x256xbf16> to vector<1x128x256xbf16>
    tpu.vector_store %arg6[%c0_9, %c0_10, %c0_11], %16 {strides = array<i32>} : memref<1x128x256xbf16, #tpu.memory_space<vmem>>, vector<1x128x256xbf16>,
    return
  }
  func.func @transform_0(%arg0: i32, %arg1: i32) -> (i32, i32, i32) {
    %c0_i32 = arith.constant 0 : i32
    %c0_i32_0 = arith.constant 0 : i32
    return %arg0, %c0_i32, %arg1 : i32, i32, i32
  }
  func.func @transform_1(%arg0: i32, %arg1: i32) -> (i32, i32) {
    %c0_i32 = arith.constant 0 : i32
    %c0_i32_0 = arith.constant 0 : i32
    %c0_i32_1 = arith.constant 0 : i32
    return %c0_i32, %c0_i32_0 : i32, i32
  }
  func.func @transform_2(%arg0: i32, %arg1: i32) -> (i32, i32) {
    %c0_i32 = arith.constant 0 : i32
    %c0_i32_0 = arith.constant 0 : i32
    %c0_i32_1 = arith.constant 0 : i32
    return %c0_i32, %c0_i32_0 : i32, i32
  }
  func.func @transform_3(%arg0: i32, %arg1: i32) -> (i32, i32) {
    %c0_i32 = arith.constant 0 : i32
    %c0_i32_0 = arith.constant 0 : i32
    %c0_i32_1 = arith.constant 0 : i32
    return %c0_i32, %c0_i32_0 : i32, i32
  }
  func.func @transform_4(%arg0: i32, %arg1: i32) -> (i32, i32, i32) {
    %c0_i32 = arith.constant 0 : i32
    %c0_i32_0 = arith.constant 0 : i32
    return %arg0, %c0_i32, %arg1 : i32, i32, i32
  }
}

</mosaic_0001>

<llo_original>
// kernel: trans_basic_conv2d.1
$region0: #{trans_basic_conv2d.1}
  #allocation0 [shape = 'u32[]', space=smem, size = 0x4, offset = 0x4, fixed_abs, tag = 'smem constant byte address 0x4 - core index']
  #allocation1 [shape = 'u32[144,128]{1,0:T(1,128)}', space=vmem, size = 0x12000, scoped, tag = 'internal scratch']
  %s0 = inlined_call_operand.vmem [shape: f32[2,32,256], index: 0, kind: input, shape index: {}]
  %s1 = inlined_call_operand.vmem [shape: bf16[128,32], index: 1, kind: input, shape index: {}]
  %s2 = inlined_call_operand.vmem [shape: f32[128,1], index: 2, kind: input, shape index: {}]
  %s3 = inlined_call_operand.vmem [shape: f32[128,1], index: 3, kind: input, shape index: {}]
  %s4 = inlined_call_operand.vmem [shape: bf16[2,128,256], index: 4, kind: output, shape index: {}]
  %s5 = sld [smem:[#allocation0]]
  $region49: #{trans_basic_conv2d.1} parent=0
    _
  %s7 = ssub.s32 1, %s5
  %s8 = scalar_select 0, %s7, %s5
  loop: start=0, step=1, limit=4
  $region2: #{trans_basic_conv2d.1} parent=0 // loop_pre_header
    _
  $region3: #{trans_basic_conv2d.1} parent=0 // loop_header
    %s10 = sphi 0, %s14
    %p11 = scmp.ge.s32.totalorder %s10, 4
    %s17 = sphi 0, %s29
    %s18 = sphi 0, %s25
    %s19 = sphi 0, %s17
    %s20 = sphi 0, %s18
    %s21 = sphi 0, %s19
    %s22 = sphi 0, %s20
    %s34 = sphi 0, %s36
    %s37 = sphi 0, %s34
    %s38 = sphi 0, %s37
    %s54 = sphi 0, %s38
    %s58 = sphi 0, %s58
    %s60 = sphi 0, %s58
    %s61 = sphi 0, %s60
    %s75 = sphi 0, %s61
    %s79 = sphi 0, %s79
    %s81 = sphi 0, %s79
    %s82 = sphi 0, %s81
    %s96 = sphi 0, %s82
    %s100 = sphi 0, %s100
    %s102 = sphi 0, %s100
    %s103 = sphi 0, %s102
    %s117 = sphi 0, %s103
    %s125 = sphi 0, %s127
    %s128 = sphi 0, %s125
    %s129 = sphi 0, %s128
    %s145 = sphi 0, %s129
  $region4: #{trans_basic_conv2d.1} parent=0 // loop_header_branch
    %13 = sbr.rel (%p11) target = $region8
  $region5: #{trans_basic_conv2d.1} parent=0 // loop_body
    %s15 = ssub.s32 %s10, 1
    %s16 = ssub.s32 %s10, 2
    %s23 = sadd.s32 1, %s18
    %p24 = scmp.ge.s32.totalorder %s23, 1
    %s25 = scalar_select %p24, 0, %s23
    %s26 = sadd.s32 1, %s17
    %s27 = scalar_select %p24, %s26, %s17
    %p28 = scmp.ge.s32.totalorder %s27, 2
    %s29 = scalar_select %p28, 0, %s27
    %s30 = ssub.s32 %s17, %s29
    %s31 = ssub.s32 %s18, %s25
    %s32 = sor.u32 %s30, %s31
    %p33 = scmp.eq.s32.totalorder %s32, 0
    %s35 = sadd.s32 %s34, 1
    %s36 = scalar_select %p33, %s34, %s35
    %p39 = pneg %p33
    %p40 = scmp.eq.s32.totalorder %s10, 1
    %p41 = por %p39, %p40
    %p42 = scmp.ne.s32.totalorder %s34, %s37
    %p43 = scmp.eq.s32.totalorder %s10, 0
    %p44 = por %p42, %p43
    %p45 = scmp.ne.s32.totalorder %s34, %s37
    %p46 = scmp.eq.s32.totalorder %s15, 1
    %p47 = por %p45, %p46
    %p48 = scmp.ne.s32.totalorder %s37, %s38
    %p49 = scmp.eq.s32.totalorder %s15, 0
    %p50 = por %p48, %p49
    %p51 = scmp.ne.s32.totalorder %s37, %s38
    %p52 = scmp.eq.s32.totalorder %s16, 1
    %p53 = por %p51, %p52
    %p55 = scmp.ne.s32.totalorder %s38, %s54
    %p56 = scmp.eq.s32.totalorder %s16, 0
    %p57 = por %p55, %p56
    %s59 = sadd.s32 %s58, 1
    %p62 = scmp.eq.s32.totalorder %s10, 1
    %p63 = scmp.ne.s32.totalorder %s58, %s60
    %p64 = scmp.eq.s32.totalorder %s10, 0
    %p65 = por %p63, %p64
    %p66 = scmp.ne.s32.totalorder %s58, %s60
    %p67 = scmp.eq.s32.totalorder %s15, 1
    %p68 = por %p66, %p67
    %p69 = scmp.ne.s32.totalorder %s60, %s61
    %p70 = scmp.eq.s32.totalorder %s15, 0
    %p71 = por %p69, %p70
    %p72 = scmp.ne.s32.totalorder %s60, %s61
    %p73 = scmp.eq.s32.totalorder %s16, 1
    %p74 = por %p72, %p73
    %p76 = scmp.ne.s32.totalorder %s61, %s75
    %p77 = scmp.eq.s32.totalorder %s16, 0
    %p78 = por %p76, %p77
    %s80 = sadd.s32 %s79, 1
    %p83 = scmp.eq.s32.totalorder %s10, 1
    %p84 = scmp.ne.s32.totalorder %s79, %s81
    %p85 = scmp.eq.s32.totalorder %s10, 0
    %p86 = por %p84, %p85
    %p87 = scmp.ne.s32.totalorder %s79, %s81
    %p88 = scmp.eq.s32.totalorder %s15, 1
    %p89 = por %p87, %p88
    %p90 = scmp.ne.s32.totalorder %s81, %s82
    %p91 = scmp.eq.s32.totalorder %s15, 0
    %p92 = por %p90, %p91
    %p93 = scmp.ne.s32.totalorder %s81, %s82
    %p94 = scmp.eq.s32.totalorder %s16, 1
    %p95 = por %p93, %p94
    %p97 = scmp.ne.s32.totalorder %s82, %s96
    %p98 = scmp.eq.s32.totalorder %s16, 0
    %p99 = por %p97, %p98
    %s101 = sadd.s32 %s100, 1
    %p104 = scmp.eq.s32.totalorder %s10, 1
    %p105 = scmp.ne.s32.totalorder %s100, %s102
    %p106 = scmp.eq.s32.totalorder %s10, 0
    %p107 = por %p105, %p106
    %p108 = scmp.ne.s32.totalorder %s100, %s102
    %p109 = scmp.eq.s32.totalorder %s15, 1
    %p110 = por %p108, %p109
    %p111 = scmp.ne.s32.totalorder %s102, %s103
    %p112 = scmp.eq.s32.totalorder %s15, 0
    %p113 = por %p111, %p112
    %p114 = scmp.ne.s32.totalorder %s102, %s103
    %p115 = scmp.eq.s32.totalorder %s16, 1
    %p116 = por %p114, %p115
    %p118 = scmp.ne.s32.totalorder %s103, %s117
    %p119 = scmp.eq.s32.totalorder %s16, 0
    %p120 = por %p118, %p119
    %s121 = ssub.s32 %s17, %s29
    %s122 = ssub.s32 %s18, %s25
    %s123 = sor.u32 %s121, %s122
    %p124 = scmp.eq.s32.totalorder %s123, 0
    %s126 = sadd.s32 %s125, 1
    %s127 = scalar_select %p124, %s125, %s126
    %p130 = pneg %p124
    %p131 = scmp.eq.s32.totalorder %s10, 1
    %p132 = por %p130, %p131
    %p133 = scmp.ne.s32.totalorder %s125, %s128
    %p134 = scmp.eq.s32.totalorder %s10, 0
    %p135 = por %p133, %p134
    %p136 = scmp.ne.s32.totalorder %s125, %s128
    %p137 = scmp.eq.s32.totalorder %s15, 1
    %p138 = por %p136, %p137
    %p139 = scmp.ne.s32.totalorder %s128, %s129
    %p140 = scmp.eq.s32.totalorder %s15, 0
    %p141 = por %p139, %p140
    %p142 = scmp.ne.s32.totalorder %s128, %s129
    %p143 = scmp.eq.s32.totalorder %s16, 1
    %p144 = por %p142, %p143
    %p146 = scmp.ne.s32.totalorder %s129, %s145
    %p147 = scmp.eq.s32.totalorder %s16, 0
    %p148 = por %p146, %p147
    %p149 = scmp.le.s32.totalorder 1, %s10
    %p150 = scmp.lt.s32.totalorder %s10, 3
    %p151 = pnand %p149, %p150
    %p152 = pneg %p151
    // Predicated region
    $region9: #{trans_basic_conv2d.1} parent=5 // pred_check
      _
    $region10: #{trans_basic_conv2d.1} parent=5 // pred_check_branch
      %154 = sbr.rel (%p151) target = $region12
    $region11: #{trans_basic_conv2d.1} parent=5 // pred_region
      %s155 = ssub.s32 %s10, 1
      // Predicated region
      $region13: #{trans_basic_conv2d.1} parent=11 // pred_check
        %p156 = pneg %p71
      $region14: #{trans_basic_conv2d.1} parent=11 // pred_check_branch
        %158 = sbr.rel (%p156) target = $region16
      $region15: #{trans_basic_conv2d.1} parent=11 // pred_region
        _
      $region16: #{trans_basic_conv2d.1} parent=11 // pred_fallthru
        _
      // Predicated region
      $region17: #{trans_basic_conv2d.1} parent=11 // pred_check
        %p159 = pneg %p92
      $region18: #{trans_basic_conv2d.1} parent=11 // pred_check_branch
        %161 = sbr.rel (%p159) target = $region20
      $region19: #{trans_basic_conv2d.1} parent=11 // pred_region
        _
      $region20: #{trans_basic_conv2d.1} parent=11 // pred_fallthru
        _
      // Predicated region
      $region21: #{trans_basic_conv2d.1} parent=11 // pred_check
        %p162 = pneg %p113
      $region22: #{trans_basic_conv2d.1} parent=11 // pred_check_branch
        %164 = sbr.rel (%p162) target = $region24
      $region23: #{trans_basic_conv2d.1} parent=11 // pred_region
        _
      $region24: #{trans_basic_conv2d.1} parent=11 // pred_fallthru
        _
    $region12: #{trans_basic_conv2d.1} parent=5 // pred_fallthru
      _
    %p165 = scmp.lt.s32.totalorder %s10, 2
    // Predicated region
    $region25: #{trans_basic_conv2d.1} parent=5 // pred_check
      %p166 = pneg %p165
    $region26: #{trans_basic_conv2d.1} parent=5 // pred_check_branch
      %168 = sbr.rel (%p166) target = $region28
    $region27: #{trans_basic_conv2d.1} parent=5 // pred_region
      // Predicated region
      $region29: #{trans_basic_conv2d.1} parent=27 // pred_check
        %p169 = pneg %p44
      $region30: #{trans_basic_conv2d.1} parent=27 // pred_check_branch
        %171 = sbr.rel (%p169) target = $region32
      $region31: #{trans_basic_conv2d.1} parent=27 // pred_region
        %s172 = smul.u32 2, %s18
        %p173 = scmp.lt.s32.totalorder %s17, 1
        %s174 = scalar_select %p173, %s17, 1
        %p175 = scmp.lt.s32.totalorder %s172, 1
        %s176 = scalar_select %p175, %s172, 1
        %s177 = smul.addr %s174, 8
        %s178 = sadd.s32 %s176, %s177
        %s179 = smul.addr %s178, 8
        %s180 = scalar_lea.vmem %s0, %s179
        %s181 = smul.u32 2, %s18
      $region32: #{trans_basic_conv2d.1} parent=27 // pred_fallthru
        _
    $region28: #{trans_basic_conv2d.1} parent=5 // pred_fallthru
      _
    %p182 = scmp.le.s32.totalorder 1, %s10
    %p183 = scmp.lt.s32.totalorder %s10, 3
    %p184 = pnand %p182, %p183
    %p185 = pneg %p184
    // Predicated region
    $region33: #{trans_basic_conv2d.1} parent=5 // pred_check
      _
    $region34: #{trans_basic_conv2d.1} parent=5 // pred_check_branch
      %187 = sbr.rel (%p184) target = $region36
    $region35: #{trans_basic_conv2d.1} parent=5 // pred_region
      %s188 = ssub.s32 %s10, 1
      %s189 = smul.u32 2, %s20
      %p190 = scmp.lt.s32.totalorder %s19, 1
      %s191 = scalar_select %p190, %s19, 1
      %p192 = scmp.lt.s32.totalorder %s189, 1
      %s193 = scalar_select %p192, %s189, 1
      %s194 = smul.addr %s191, 8
      %s195 = sadd.s32 %s193, %s194
      %s196 = smul.addr %s195, 8
      %s197 = scalar_lea.vmem %s0, %s196
      %p198 = pneg %p50
      %p199 = pneg %p47
      %p200 = pneg %p71
      %p201 = pneg %p68
      %p202 = pneg %p92
      %p203 = pneg %p89
      %p204 = pneg %p113
      %p205 = pneg %p110
      %p206 = pneg %p141
      %p207 = pneg %p138
      %s208 = smul.u32 2, %s20
      %p209 = scmp.lt.s32.totalorder %s19, 1
      %s210 = scalar_select %p209, %s19, 1
      %p211 = scmp.lt.s32.totalorder %s208, 1
      %s212 = scalar_select %p211, %s208, 1
      %s213 = smul.addr %s210, 32
      %s214 = sadd.s32 %s212, %s213
      %s215 = smul.addr %s214, 4
      %s216 = scalar_lea.vmem %s4, %s215
      %s217 = smul.u32 2, %s20
      %p218 = scmp.lt.s32.totalorder %s19, 1
      %s219 = scalar_select %p218, %s19, 1
      %p220 = scmp.lt.s32.totalorder %s217, 1
      %s221 = scalar_select %p220, %s217, 1
      %s222 = smul.addr %s219, 8
      %s223 = sadd.s32 %s221, %s222
      %s224 = smul.addr %s223, 8
      %s225 = scalar_lea.vmem %s0, %s224
      %s226 = smul.u32 2, %s20
      %s227 = smul.u32 2, %s20
      %p228 = scmp.lt.s32.totalorder %s19, 1
      %s229 = scalar_select %p228, %s19, 1
      %p230 = scmp.lt.s32.totalorder %s227, 1
      %s231 = scalar_select %p230, %s227, 1
      %s232 = smul.addr %s229, 32
      %s233 = sadd.s32 %s231, %s232
      %s234 = smul.addr %s233, 4
      %s235 = scalar_lea.vmem %s4, %s234
      %s236 = smul.u32 2, %s20
      %v238 = vld [vmem:[%s225] sm:$0xff]
      %v239 = vld [vmem:[%s225 + $0x8] sm:$0xff]
      %v240 = vld [vmem:[%s225 + $0x10] sm:$0xff]
      %v241 = vld [vmem:[%s225 + $0x18] sm:$0xff]
      %v242 = vld [vmem:[%s225 + $0x20] sm:$0xff]
      %v243 = vld [vmem:[%s225 + $0x28] sm:$0xff]
      %v244 = vld [vmem:[%s225 + $0x30] sm:$0xff]
      %v245 = vld [vmem:[%s225 + $0x38] sm:$0xff]
      %v246 = vpack.c.bf16 %v240, %v238
      %v247 = vpack.c.bf16 %v241, %v239
      %v248 = vpack.c.bf16 %v244, %v242
      %v249 = vpack.c.bf16 %v245, %v243
      %v250 = vld [vmem:[%s1] sm:$0xf]
      %v251 = vld [vmem:[%s1 + $0x4] sm:$0xf]
      %v252 = vld [vmem:[%s1 + $0x8] sm:$0xf]
      %v253 = vld [vmem:[%s1 + $0xc] sm:$0xf]
      %v254 = vld [vmem:[%s1 + $0x10] sm:$0xf]
      %v255 = vld [vmem:[%s1 + $0x14] sm:$0xf]
      %v256 = vld [vmem:[%s1 + $0x18] sm:$0xf]
      %v257 = vld [vmem:[%s1 + $0x1c] sm:$0xf]
      %v258 = vld [vmem:[%s1 + $0x20] sm:$0xf]
      %v259 = vld [vmem:[%s1 + $0x24] sm:$0xf]
      %v260 = vld [vmem:[%s1 + $0x28] sm:$0xf]
      %v261 = vld [vmem:[%s1 + $0x2c] sm:$0xf]
      %v262 = vld [vmem:[%s1 + $0x30] sm:$0xf]
      %v263 = vld [vmem:[%s1 + $0x34] sm:$0xf]
      %v264 = vld [vmem:[%s1 + $0x38] sm:$0xf]
      %v265 = vld [vmem:[%s1 + $0x3c] sm:$0xf]
      %v282 = vunpack.c.l.b16 %v250
      %v283 = vunpack.c.l.b16 %v251
      %v284 = vunpack.c.l.b16 %v252
      %v285 = vunpack.c.l.b16 %v253
      %v286 = vunpack.c.l.b16 %v254
      %v287 = vunpack.c.l.b16 %v255
      %v288 = vunpack.c.l.b16 %v256
      %v289 = vunpack.c.l.b16 %v257
      %v290 = vunpack.c.l.b16 %v258
      %v291 = vunpack.c.l.b16 %v259
      %v292 = vunpack.c.l.b16 %v260
      %v293 = vunpack.c.l.b16 %v261
      %v294 = vunpack.c.l.b16 %v262
      %v295 = vunpack.c.l.b16 %v263
      %v296 = vunpack.c.l.b16 %v264
      %v297 = vunpack.c.l.b16 %v265
      %v298 = vpack.c.b16 %v283, %v282
      %v299 = vpack.c.b16 %v285, %v284
      %v300 = vpack.c.b16 %v287, %v286
      %v301 = vpack.c.b16 %v289, %v288
      %v302 = vpack.c.b16 %v291, %v290
      %v303 = vpack.c.b16 %v293, %v292
      %v304 = vpack.c.b16 %v295, %v294
      %v305 = vpack.c.b16 %v297, %v296
      %vm306 = vcmask 261120
      %v308 = vsel %vm306, %v298, 0
      %v311 = vsel %vm306, %v299, 0
      %v314 = vsel %vm306, %v300, 0
      %v317 = vsel %vm306, %v301, 0
      %v320 = vsel %vm306, %v302, 0
      %v323 = vsel %vm306, %v303, 0
      %v326 = vsel %vm306, %v304, 0
      %v329 = vsel %vm306, %v305, 0
      %331 = vmatprep.subr.bf16.mxu0 %v247
      %332 = vmatpush1.bf16.msra.mxu0 %v246
      %333 = vmatprep.subr.bf16.mxu0 %v249
      %334 = vmatpush1.bf16.msra.mxu0 %v248
      %335 = vmatprep.subr.bf16.mxu0 0
      %336 = vmatpush1.bf16.msra.mxu0 0
      %337 = vmatprep.subr.bf16.mxu0 0
      %338 = vmatpush1.bf16.msra.mxu0 0
      %339 = vmatprep.subr.bf16.mxu0 0
      %340 = vmatpush1.bf16.msra.mxu0 0
      %341 = vmatprep.subr.bf16.mxu0 0
      %342 = vmatpush1.bf16.msra.mxu0 0
      %343 = vmatprep.subr.bf16.mxu0 0
      %344 = vmatpush1.bf16.msra.mxu0 0
      %345 = vmatprep.subr.bf16.mxu0 0
      %346 = vmatpush1.bf16.msra.mxu0 0
      %347 = vmatprep.subr.bf16.mxu0 0
      %348 = vmatpush1.bf16.msra.mxu0 0
      %349 = vmatprep.subr.bf16.mxu0 0
      %350 = vmatpush1.bf16.msra.mxu0 0
      %351 = vmatprep.subr.bf16.mxu0 0
      %352 = vmatpush1.bf16.msra.mxu0 0
      %353 = vmatprep.subr.bf16.mxu0 0
      %354 = vmatpush1.bf16.msra.mxu0 0
      %355 = vmatprep.subr.bf16.mxu0 0
      %356 = vmatpush1.bf16.msra.mxu0 0
      %357 = vmatprep.subr.bf16.mxu0 0
      %358 = vmatpush1.bf16.msra.mxu0 0
      %359 = vmatprep.subr.bf16.mxu0 0
      %360 = vmatpush1.bf16.msra.mxu0 0
      %361 = vmatprep.subr.bf16.mxu0 0
      %362 = vmatpush1.bf16.msra.mxu0 0
      %363 = vmatprep.mubr.bf16.mxu0 0
      %364 = vmatmul.mubr.bf16.gmra.mrb[0].mxu0 %v308
      %v365 = vpop.f32.mrb[0].mxu0
      %v366 = vadd.f32 0.0, %v365
      %v367 = vpop.f32.mrb[0].mxu0
      %v368 = vadd.f32 0.0, %v367
      %v369 = vpop.f32.mrb[0].mxu0
      %v370 = vadd.f32 0.0, %v369
      %v371 = vpop.f32.mrb[0].mxu0
      %v372 = vadd.f32 0.0, %v371
      %373 = vmatprep.mubr.bf16.mxu0 0
      %374 = vmatmul.mubr.bf16.gmra.mrb[0].mxu0 %v311
      %v375 = vpop.f32.mrb[0].mxu0
      %v376 = vadd.f32 0.0, %v375
      %v377 = vpop.f32.mrb[0].mxu0
      %v378 = vadd.f32 0.0, %v377
      %v379 = vpop.f32.mrb[0].mxu0
      %v380 = vadd.f32 0.0, %v379
      %v381 = vpop.f32.mrb[0].mxu0
      %v382 = vadd.f32 0.0, %v381
      %383 = vmatprep.mubr.bf16.mxu0 0
      %384 = vmatmul.mubr.bf16.gmra.mrb[0].mxu0 %v314
      %v385 = vpop.f32.mrb[0].mxu0
      %v386 = vadd.f32 0.0, %v385
      %v387 = vpop.f32.mrb[0].mxu0
      %v388 = vadd.f32 0.0, %v387
      %v389 = vpop.f32.mrb[0].mxu0
      %v390 = vadd.f32 0.0, %v389
      %v391 = vpop.f32.mrb[0].mxu0
      %v392 = vadd.f32 0.0, %v391
      %393 = vmatprep.mubr.bf16.mxu0 0
      %394 = vmatmul.mubr.bf16.gmra.mrb[0].mxu0 %v317
      %v395 = vpop.f32.mrb[0].mxu0
      %v396 = vadd.f32 0.0, %v395
      %v397 = vpop.f32.mrb[0].mxu0
      %v398 = vadd.f32 0.0, %v397
      %v399 = vpop.f32.mrb[0].mxu0
      %v400 = vadd.f32 0.0, %v399
      %v401 = vpop.f32.mrb[0].mxu0
      %v402 = vadd.f32 0.0, %v401
      %403 = vmatprep.mubr.bf16.mxu0 0
      %404 = vmatmul.mubr.bf16.gmra.mrb[0].mxu0 %v320
      %v405 = vpop.f32.mrb[0].mxu0
      %v406 = vadd.f32 0.0, %v405
      %v407 = vpop.f32.mrb[0].mxu0
      %v408 = vadd.f32 0.0, %v407
      %v409 = vpop.f32.mrb[0].mxu0
      %v410 = vadd.f32 0.0, %v409
      %v411 = vpop.f32.mrb[0].mxu0
      %v412 = vadd.f32 0.0, %v411
      %413 = vmatprep.mubr.bf16.mxu0 0
      %414 = vmatmul.mubr.bf16.gmra.mrb[0].mxu0 %v323
      %v415 = vpop.f32.mrb[0].mxu0
      %v416 = vadd.f32 0.0, %v415
      %v417 = vpop.f32.mrb[0].mxu0
      %v418 = vadd.f32 0.0, %v417
      %v419 = vpop.f32.mrb[0].mxu0
      %v420 = vadd.f32 0.0, %v419
      %v421 = vpop.f32.mrb[0].mxu0
      %v422 = vadd.f32 0.0, %v421
      %423 = vmatprep.mubr.bf16.mxu0 0
      %424 = vmatmul.mubr.bf16.gmra.mrb[0].mxu0 %v326
      %v425 = vpop.f32.mrb[0].mxu0
      %v426 = vadd.f32 0.0, %v425
      %v427 = vpop.f32.mrb[0].mxu0
      %v428 = vadd.f32 0.0, %v427
      %v429 = vpop.f32.mrb[0].mxu0
      %v430 = vadd.f32 0.0, %v429
      %v431 = vpop.f32.mrb[0].mxu0
      %v432 = vadd.f32 0.0, %v431
      %433 = vmatprep.mubr.bf16.mxu0 0
      %434 = vmatmul.mubr.bf16.gmra.mrb[0].mxu0 %v329
      %v435 = vpop.f32.mrb[0].mxu0
      %v436 = vadd.f32 0.0, %v435
      %v437 = vpop.f32.mrb[0].mxu0
      %v438 = vadd.f32 0.0, %v437
      %v439 = vpop.f32.mrb[0].mxu0
      %v440 = vadd.f32 0.0, %v439
      %v441 = vpop.f32.mrb[0].mxu0
      %v442 = vadd.f32 0.0, %v441
      %443 = vdwg.mxu0
      %v444 = vld [vmem:[%s2] sm:$0xff]
      %v445 = vld [vmem:[%s2 + $0x8] sm:$0xff]
      %v446 = vld [vmem:[%s2 + $0x10] sm:$0xff]
      %v447 = vld [vmem:[%s2 + $0x18] sm:$0xff]
      %v448 = vld [vmem:[%s2 + $0x20] sm:$0xff]
      %v449 = vld [vmem:[%s2 + $0x28] sm:$0xff]
      %v450 = vld [vmem:[%s2 + $0x30] sm:$0xff]
      %v451 = vld [vmem:[%s2 + $0x38] sm:$0xff]
      %v452 = vld [vmem:[%s2 + $0x40] sm:$0xff]
      %v453 = vld [vmem:[%s2 + $0x48] sm:$0xff]
      %v454 = vld [vmem:[%s2 + $0x50] sm:$0xff]
      %v455 = vld [vmem:[%s2 + $0x58] sm:$0xff]
      %v456 = vld [vmem:[%s2 + $0x60] sm:$0xff]
      %v457 = vld [vmem:[%s2 + $0x68] sm:$0xff]
      %v458 = vld [vmem:[%s2 + $0x70] sm:$0xff]
      %v459 = vld [vmem:[%s2 + $0x78] sm:$0xff]
      %461 = vset.pattern.permute.xlu0 0
      %462 = vperm.xlu0 %461, %v444
      %v463 = vpop.permute.xlu0 %462
      %466 = vset.pattern.permute.xlu0 0
      %467 = vperm.xlu0 %466, %v445
      %v468 = vpop.permute.xlu0 %467
      %471 = vset.pattern.permute.xlu0 0
      %472 = vperm.xlu0 %471, %v446
      %v473 = vpop.permute.xlu0 %472
      %476 = vset.pattern.permute.xlu0 0
      %477 = vperm.xlu0 %476, %v447
      %v478 = vpop.permute.xlu0 %477
      %481 = vset.pattern.permute.xlu0 0
      %482 = vperm.xlu0 %481, %v448
      %v483 = vpop.permute.xlu0 %482
      %486 = vset.pattern.permute.xlu0 0
      %487 = vperm.xlu0 %486, %v449
      %v488 = vpop.permute.xlu0 %487
      %491 = vset.pattern.permute.xlu0 0
      %492 = vperm.xlu0 %491, %v450
      %v493 = vpop.permute.xlu0 %492
      %496 = vset.pattern.permute.xlu0 0
      %497 = vperm.xlu0 %496, %v451
      %v498 = vpop.permute.xlu0 %497
      %501 = vset.pattern.permute.xlu0 0
      %502 = vperm.xlu0 %501, %v452
      %v503 = vpop.permute.xlu0 %502
      %506 = vset.pattern.permute.xlu0 0
      %507 = vperm.xlu0 %506, %v453
      %v508 = vpop.permute.xlu0 %507
      %511 = vset.pattern.permute.xlu0 0
      %512 = vperm.xlu0 %511, %v454
      %v513 = vpop.permute.xlu0 %512
      %516 = vset.pattern.permute.xlu0 0
      %517 = vperm.xlu0 %516, %v455
      %v518 = vpop.permute.xlu0 %517
      %521 = vset.pattern.permute.xlu0 0
      %522 = vperm.xlu0 %521, %v456
      %v523 = vpop.permute.xlu0 %522
      %526 = vset.pattern.permute.xlu0 0
      %527 = vperm.xlu0 %526, %v457
      %v528 = vpop.permute.xlu0 %527
      %531 = vset.pattern.permute.xlu0 0
      %532 = vperm.xlu0 %531, %v458
      %v533 = vpop.permute.xlu0 %532
      %536 = vset.pattern.permute.xlu0 0
      %537 = vperm.xlu0 %536, %v459
      %v538 = vpop.permute.xlu0 %537
      %v540 = vmul.f32 %v366, %v463
      %v541 = vmul.f32 %v368, %v463
      %v542 = vmul.f32 %v370, %v468
      %v543 = vmul.f32 %v372, %v468
      %v544 = vmul.f32 %v376, %v473
      %v545 = vmul.f32 %v378, %v473
      %v546 = vmul.f32 %v380, %v478
      %v547 = vmul.f32 %v382, %v478
      %v548 = vmul.f32 %v386, %v483
      %v549 = vmul.f32 %v388, %v483
      %v550 = vmul.f32 %v390, %v488
      %v551 = vmul.f32 %v392, %v488
      %v552 = vmul.f32 %v396, %v493
      %v553 = vmul.f32 %v398, %v493
      %v554 = vmul.f32 %v400, %v498
      %v555 = vmul.f32 %v402, %v498
      %v556 = vmul.f32 %v406, %v503
      %v557 = vmul.f32 %v408, %v503
      %v558 = vmul.f32 %v410, %v508
      %v559 = vmul.f32 %v412, %v508
      %v560 = vmul.f32 %v416, %v513
      %v561 = vmul.f32 %v418, %v513
      %v562 = vmul.f32 %v420, %v518
      %v563 = vmul.f32 %v422, %v518
      %v564 = vmul.f32 %v426, %v523
      %v565 = vmul.f32 %v428, %v523
      %v566 = vmul.f32 %v430, %v528
      %v567 = vmul.f32 %v432, %v528
      %v568 = vmul.f32 %v436, %v533
      %v569 = vmul.f32 %v438, %v533
      %v570 = vmul.f32 %v440, %v538
      %v571 = vmul.f32 %v442, %v538
      %v572 = vld [vmem:[%s3] sm:$0xff]
      %v573 = vld [vmem:[%s3 + $0x8] sm:$0xff]
      %v574 = vld [vmem:[%s3 + $0x10] sm:$0xff]
      %v575 = vld [vmem:[%s3 + $0x18] sm:$0xff]
      %v576 = vld [vmem:[%s3 + $0x20] sm:$0xff]
      %v577 = vld [vmem:[%s3 + $0x28] sm:$0xff]
      %v578 = vld [vmem:[%s3 + $0x30] sm:$0xff]
      %v579 = vld [vmem:[%s3 + $0x38] sm:$0xff]
      %v580 = vld [vmem:[%s3 + $0x40] sm:$0xff]
      %v581 = vld [vmem:[%s3 + $0x48] sm:$0xff]
      %v582 = vld [vmem:[%s3 + $0x50] sm:$0xff]
      %v583 = vld [vmem:[%s3 + $0x58] sm:$0xff]
      %v584 = vld [vmem:[%s3 + $0x60] sm:$0xff]
      %v585 = vld [vmem:[%s3 + $0x68] sm:$0xff]
      %v586 = vld [vmem:[%s3 + $0x70] sm:$0xff]
      %v587 = vld [vmem:[%s3 + $0x78] sm:$0xff]
      %589 = vset.pattern.permute.xlu0 0
      %590 = vperm.xlu0 %589, %v572
      %v591 = vpop.permute.xlu0 %590
      %594 = vset.pattern.permute.xlu0 0
      %595 = vperm.xlu0 %594, %v573
      %v596 = vpop.permute.xlu0 %595
      %599 = vset.pattern.permute.xlu0 0
      %600 = vperm.xlu0 %599, %v574
      %v601 = vpop.permute.xlu0 %600
      %604 = vset.pattern.permute.xlu0 0
      %605 = vperm.xlu0 %604, %v575
      %v606 = vpop.permute.xlu0 %605
      %609 = vset.pattern.permute.xlu0 0
      %610 = vperm.xlu0 %609, %v576
      %v611 = vpop.permute.xlu0 %610
      %614 = vset.pattern.permute.xlu0 0
      %615 = vperm.xlu0 %614, %v577
      %v616 = vpop.permute.xlu0 %615
      %619 = vset.pattern.permute.xlu0 0
      %620 = vperm.xlu0 %619, %v578
      %v621 = vpop.permute.xlu0 %620
      %624 = vset.pattern.permute.xlu0 0
      %625 = vperm.xlu0 %624, %v579
      %v626 = vpop.permute.xlu0 %625
      %629 = vset.pattern.permute.xlu0 0
      %630 = vperm.xlu0 %629, %v580
      %v631 = vpop.permute.xlu0 %630
      %634 = vset.pattern.permute.xlu0 0
      %635 = vperm.xlu0 %634, %v581
      %v636 = vpop.permute.xlu0 %635
      %639 = vset.pattern.permute.xlu0 0
      %640 = vperm.xlu0 %639, %v582
      %v641 = vpop.permute.xlu0 %640
      %644 = vset.pattern.permute.xlu0 0
      %645 = vperm.xlu0 %644, %v583
      %v646 = vpop.permute.xlu0 %645
      %649 = vset.pattern.permute.xlu0 0
      %650 = vperm.xlu0 %649, %v584
      %v651 = vpop.permute.xlu0 %650
      %654 = vset.pattern.permute.xlu0 0
      %655 = vperm.xlu0 %654, %v585
      %v656 = vpop.permute.xlu0 %655
      %659 = vset.pattern.permute.xlu0 0
      %660 = vperm.xlu0 %659, %v586
      %v661 = vpop.permute.xlu0 %660
      %664 = vset.pattern.permute.xlu0 0
      %665 = vperm.xlu0 %664, %v587
      %v666 = vpop.permute.xlu0 %665
      %v668 = vadd.f32 %v540, %v591
      %v669 = vadd.f32 %v541, %v591
      %v670 = vadd.f32 %v542, %v596
      %v671 = vadd.f32 %v543, %v596
      %v672 = vadd.f32 %v544, %v601
      %v673 = vadd.f32 %v545, %v601
      %v674 = vadd.f32 %v546, %v606
      %v675 = vadd.f32 %v547, %v606
      %v676 = vadd.f32 %v548, %v611
      %v677 = vadd.f32 %v549, %v611
      %v678 = vadd.f32 %v550, %v616
      %v679 = vadd.f32 %v551, %v616
      %v680 = vadd.f32 %v552, %v621
      %v681 = vadd.f32 %v553, %v621
      %v682 = vadd.f32 %v554, %v626
      %v683 = vadd.f32 %v555, %v626
      %v684 = vadd.f32 %v556, %v631
      %v685 = vadd.f32 %v557, %v631
      %v686 = vadd.f32 %v558, %v636
      %v687 = vadd.f32 %v559, %v636
      %v688 = vadd.f32 %v560, %v641
      %v689 = vadd.f32 %v561, %v641
      %v690 = vadd.f32 %v562, %v646
      %v691 = vadd.f32 %v563, %v646
      %v692 = vadd.f32 %v564, %v651
      %v693 = vadd.f32 %v565, %v651
      %v694 = vadd.f32 %v566, %v656
      %v695 = vadd.f32 %v567, %v656
      %v696 = vadd.f32 %v568, %v661
      %v697 = vadd.f32 %v569, %v661
      %v698 = vadd.f32 %v570, %v666
      %v699 = vadd.f32 %v571, %v666
      %v700 = vmax.f32 %v668, 0.0
      %v701 = vmax.f32 %v669, 0.0
      %v702 = vmax.f32 %v670, 0.0
      %v703 = vmax.f32 %v671, 0.0
      %v704 = vmax.f32 %v672, 0.0
      %v705 = vmax.f32 %v673, 0.0
      %v706 = vmax.f32 %v674, 0.0
      %v707 = vmax.f32 %v675, 0.0
      %v708 = vmax.f32 %v676, 0.0
      %v709 = vmax.f32 %v677, 0.0
      %v710 = vmax.f32 %v678, 0.0
      %v711 = vmax.f32 %v679, 0.0
      %v712 = vmax.f32 %v680, 0.0
      %v713 = vmax.f32 %v681, 0.0
      %v714 = vmax.f32 %v682, 0.0
      %v715 = vmax.f32 %v683, 0.0
      %v716 = vmax.f32 %v684, 0.0
      %v717 = vmax.f32 %v685, 0.0
      %v718 = vmax.f32 %v686, 0.0
      %v719 = vmax.f32 %v687, 0.0
      %v720 = vmax.f32 %v688, 0.0
      %v721 = vmax.f32 %v689, 0.0
      %v722 = vmax.f32 %v690, 0.0
      %v723 = vmax.f32 %v691, 0.0
      %v724 = vmax.f32 %v692, 0.0
      %v725 = vmax.f32 %v693, 0.0
      %v726 = vmax.f32 %v694, 0.0
      %v727 = vmax.f32 %v695, 0.0
      %v728 = vmax.f32 %v696, 0.0
      %v729 = vmax.f32 %v697, 0.0
      %v730 = vmax.f32 %v698, 0.0
      %v731 = vmax.f32 %v699, 0.0
      %v732 = vpack.c.bf16 %v702, %v700
      %v733 = vpack.c.bf16 %v703, %v701
      %v734 = vpack.c.bf16 %v706, %v704
      %v735 = vpack.c.bf16 %v707, %v705
      %v736 = vpack.c.bf16 %v710, %v708
      %v737 = vpack.c.bf16 %v711, %v709
      %v738 = vpack.c.bf16 %v714, %v712
      %v739 = vpack.c.bf16 %v715, %v713
      %v740 = vpack.c.bf16 %v718, %v716
      %v741 = vpack.c.bf16 %v719, %v717
      %v742 = vpack.c.bf16 %v722, %v720
      %v743 = vpack.c.bf16 %v723, %v721
      %v744 = vpack.c.bf16 %v726, %v724
      %v745 = vpack.c.bf16 %v727, %v725
      %v746 = vpack.c.bf16 %v730, %v728
      %v747 = vpack.c.bf16 %v731, %v729
      %v764 = vunpack.c.l.b16 %v732
      %v765 = vunpack.c.l.b16 %v733
      %v766 = vunpack.c.h.b16 %v732
      %v767 = vunpack.c.h.b16 %v733
      %v768 = vunpack.c.l.b16 %v734
      %v769 = vunpack.c.l.b16 %v735
      %v770 = vunpack.c.h.b16 %v734
      %v771 = vunpack.c.h.b16 %v735
      %v772 = vunpack.c.l.b16 %v736
      %v773 = vunpack.c.l.b16 %v737
      %v774 = vunpack.c.h.b16 %v736
      %v775 = vunpack.c.h.b16 %v737
      %v776 = vunpack.c.l.b16 %v738
      %v777 = vunpack.c.l.b16 %v739
      %v778 = vunpack.c.h.b16 %v738
      %v779 = vunpack.c.h.b16 %v739
      %v780 = vunpack.c.l.b16 %v740
      %v781 = vunpack.c.l.b16 %v741
      %v782 = vunpack.c.h.b16 %v740
      %v783 = vunpack.c.h.b16 %v741
      %v784 = vunpack.c.l.b16 %v742
      %v785 = vunpack.c.l.b16 %v743
      %v786 = vunpack.c.h.b16 %v742
      %v787 = vunpack.c.h.b16 %v743
      %v788 = vunpack.c.l.b16 %v744
      %v789 = vunpack.c.l.b16 %v745
      %v790 = vunpack.c.h.b16 %v744
      %v791 = vunpack.c.h.b16 %v745
      %v792 = vunpack.c.l.b16 %v746
      %v793 = vunpack.c.l.b16 %v747
      %v794 = vunpack.c.h.b16 %v746
      %v795 = vunpack.c.h.b16 %v747
      %v796 = vpack.c.b16 %v765, %v764
      %v797 = vpack.c.b16 %v767, %v766
      %v798 = vpack.c.b16 %v769, %v768
      %v799 = vpack.c.b16 %v771, %v770
      %v800 = vpack.c.b16 %v773, %v772
      %v801 = vpack.c.b16 %v775, %v774
      %v802 = vpack.c.b16 %v777, %v776
      %v803 = vpack.c.b16 %v779, %v778
      %v804 = vpack.c.b16 %v781, %v780
      %v805 = vpack.c.b16 %v783, %v782
      %v806 = vpack.c.b16 %v785, %v784
      %v807 = vpack.c.b16 %v787, %v786
      %v808 = vpack.c.b16 %v789, %v788
      %v809 = vpack.c.b16 %v791, %v790
      %v810 = vpack.c.b16 %v793, %v792
      %v811 = vpack.c.b16 %v795, %v794
      %828 = vst [vmem:[%s235] sm:$0xff] %v796
      %829 = vst [vmem:[%s235 + $0x8] sm:$0xff] %v797
      %830 = vst [vmem:[%s235 + $0x10] sm:$0xff] %v798
      %831 = vst [vmem:[%s235 + $0x18] sm:$0xff] %v799
      %832 = vst [vmem:[%s235 + $0x20] sm:$0xff] %v800
      %833 = vst [vmem:[%s235 + $0x28] sm:$0xff] %v801
      %834 = vst [vmem:[%s235 + $0x30] sm:$0xff] %v802
      %835 = vst [vmem:[%s235 + $0x38] sm:$0xff] %v803
      %836 = vst [vmem:[%s235 + $0x40] sm:$0xff] %v804
      %837 = vst [vmem:[%s235 + $0x48] sm:$0xff] %v805
      %838 = vst [vmem:[%s235 + $0x50] sm:$0xff] %v806
      %839 = vst [vmem:[%s235 + $0x58] sm:$0xff] %v807
      %840 = vst [vmem:[%s235 + $0x60] sm:$0xff] %v808
      %841 = vst [vmem:[%s235 + $0x68] sm:$0xff] %v809
      %842 = vst [vmem:[%s235 + $0x70] sm:$0xff] %v810
      %843 = vst [vmem:[%s235 + $0x78] sm:$0xff] %v811
      %s844 = smul.u32 2, %s20
      %p845 = scmp.lt.s32.totalorder %s19, 1
      %s846 = scalar_select %p845, %s19, 1
      %p847 = scmp.lt.s32.totalorder %s844, 1
      %s848 = scalar_select %p847, %s844, 1
      %s849 = smul.addr %s846, 32
      %s850 = sadd.s32 %s848, %s849
      %s851 = smul.addr %s850, 4
      %s852 = scalar_lea.vmem %s4, %s851
      // Predicated region
      $region37: #{trans_basic_conv2d.1} parent=35 // pred_check
        %p853 = pneg %p138
      $region38: #{trans_basic_conv2d.1} parent=35 // pred_check_branch
        %855 = sbr.rel (%p853) target = $region40
      $region39: #{trans_basic_conv2d.1} parent=35 // pred_region
        %s856 = smul.u32 2, %s20
      $region40: #{trans_basic_conv2d.1} parent=35 // pred_fallthru
        _
    $region36: #{trans_basic_conv2d.1} parent=5 // pred_fallthru
      _
    %p857 = scmp.le.s32.totalorder 2, %s10
    // Predicated region
    $region41: #{trans_basic_conv2d.1} parent=5 // pred_check
      %p858 = pneg %p857
    $region42: #{trans_basic_conv2d.1} parent=5 // pred_check_branch
      %860 = sbr.rel (%p858) target = $region44
    $region43: #{trans_basic_conv2d.1} parent=5 // pred_region
      %s861 = ssub.s32 %s10, 2
      // Predicated region
      $region45: #{trans_basic_conv2d.1} parent=43 // pred_check
        %p862 = pneg %p144
      $region46: #{trans_basic_conv2d.1} parent=43 // pred_check_branch
        %864 = sbr.rel (%p862) target = $region48
      $region47: #{trans_basic_conv2d.1} parent=43 // pred_region
        %s865 = smul.u32 2, %s22
        %p866 = scmp.lt.s32.totalorder %s21, 1
        %s867 = scalar_select %p866, %s21, 1
        %p868 = scmp.lt.s32.totalorder %s865, 1
        %s869 = scalar_select %p868, %s865, 1
        %s870 = smul.addr %s867, 32
        %s871 = sadd.s32 %s869, %s870
        %s872 = smul.addr %s871, 4
        %s873 = scalar_lea.vmem %s4, %s872
      $region48: #{trans_basic_conv2d.1} parent=43 // pred_fallthru
        _
    $region44: #{trans_basic_conv2d.1} parent=5 // pred_fallthru
      _
  $region6: #{trans_basic_conv2d.1} parent=0 // loop_footer
    %s14 = sadd.s32 1, %s10
  $region7: #{trans_basic_conv2d.1} parent=0 // loop_footer_branch
    %9 = sbr.rel target = $region3
  $region8: #{trans_basic_conv2d.1} parent=0 // loop_exit
    _

</llo_original>
